<compile_context>
chip_gen: v7x
topology: tpu7x:2x2x1
jax: 0.10.0
libtpu: 0.0.40
codegen_flags: <defaults>
</compile_context>

<pallas_src>
import functools

import jax
import jax.numpy as jnp
from jax.experimental import pallas as pl
from jax.experimental.pallas import tpu as pltpu


COMPUTE_DTYPE = jnp.bfloat16   # MXU input dtype; accumulation is always f32
TM = 16                        # batch tile: bf16 sublane-packed vreg is (16,128)


def _fused_sequential_kernel(*refs, relu_flags, out_dims):
    """Chain len(relu_flags) Linear(+ReLU) blocks, VMEM-resident per batch tile.

    refs = (x_ref, w0_ref, ..., w{n-1}_ref, bias_pack_ref, o_ref)
      x_ref         : (tm, d_in)        f32   (cast to bf16 in-kernel)
      w{i}_ref      : (d_i, d_{i+1})    bf16  (pre-stored, VMEM-resident)
      bias_pack_ref : (n_blocks, max_w) f32   (row i = layer-i bias, zero-padded)
      o_ref         : (tm, d_out)       f32
    """
    x_ref = refs[0]
    o_ref = refs[-1]
    n = len(relu_flags)
    w_refs = refs[1:1 + n]
    b_ref = refs[1 + n]

    y = x_ref[...].astype(COMPUTE_DTYPE)                 # in-kernel cast, (tm, d_in)
    for i, (relu, wo) in enumerate(zip(relu_flags, out_dims)):
        w = w_refs[i][...]                                # bf16 (d_i, wo)
        b = b_ref[i:i + 1, :wo]                           # f32  (1, wo), static slice
        acc = jnp.dot(y, w, preferred_element_type=jnp.float32)   # MXU, f32 acc
        acc = acc + b                                     # f32 epilogue
        if relu:
            acc = jnp.maximum(acc, 0.0)
        if i == n - 1:
            y = acc.astype(o_ref.dtype)
        else:
            y = acc.astype(COMPUTE_DTYPE)                 # re-feed MXU in bf16
    o_ref[...] = y


def fused_sequential(x, ws_bf16, bias_pack, relu_flags, out_dims, *, tm=TM):
    """Run the whole block chain as a single pallas_call over a batch grid.

    x         : (B, d_in) f32
    ws_bf16   : tuple of bf16 weights, w_i: (d_i, d_{i+1})  (pre-converted)
    bias_pack : (n_blocks, max_w) f32                        (pre-packed)
    relu_flags, out_dims: static tuples.
    """
    batch, d_in = x.shape
    d_out = out_dims[-1]
    n = len(relu_flags)

    # Pad batch up to a multiple of the batch tile (sliced off at the end).
    b_pad = pl.cdiv(batch, tm) * tm
    if b_pad != batch:
        x = jnp.pad(x, ((0, b_pad - batch), (0, 0)))
    grid = (b_pad // tm,)

    in_specs = [pl.BlockSpec((tm, d_in), lambda i: (i, 0))]           # per-step tile
    for w in ws_bf16:
        wi, wo = w.shape
        in_specs.append(pl.BlockSpec((wi, wo), lambda i: (0, 0)))     # resident
    in_specs.append(pl.BlockSpec(bias_pack.shape, lambda i: (0, 0)))  # resident

    out_spec = pl.BlockSpec((tm, d_out), lambda i: (i, 0))

    # Advisory cost estimate for XLA's scheduler.
    flops = sum(2 * b_pad * w.shape[0] * w.shape[1] for w in ws_bf16)
    bytes_accessed = (
        b_pad * d_in * 4                                   # x (f32)
        + sum(w.size * 2 for w in ws_bf16)                 # bf16 weights
        + bias_pack.size * 4                               # packed biases
        + b_pad * d_out * 4                                # output (f32)
    )
    cost = pl.CostEstimate(flops=flops, transcendentals=0,
                           bytes_accessed=bytes_accessed)

    # VMEM budget: resident weights/biases + double-buffered x/out tiles,
    # with 2x headroom, capped at 64 MiB so the same tiling is v7x-safe.
    resident = sum(w.size * 2 for w in ws_bf16) + bias_pack.size * 4
    streaming = 2 * (tm * d_in * 4) + 2 * (tm * d_out * 4)
    vmem_limit = min(64 << 20, max(32 << 20, 2 * (resident + streaming)))

    kernel = functools.partial(_fused_sequential_kernel,
                               relu_flags=tuple(relu_flags),
                               out_dims=tuple(out_dims))

    out = pl.pallas_call(
        kernel,
        out_shape=jax.ShapeDtypeStruct((b_pad, d_out), x.dtype),
        grid=grid,
        in_specs=in_specs,
        out_specs=out_spec,
        compiler_params=pltpu.CompilerParams(
            dimension_semantics=("parallel",),
            vmem_limit_bytes=vmem_limit),
        cost_estimate=cost,
    )(x, *ws_bf16, bias_pack)

    if b_pad != batch:
        out = out[:batch]
    return out


@functools.partial(jax.jit, static_argnames=("relu_flags", "out_dims"))
def _jit_fused_forward(x, ws_bf16, bias_pack, relu_flags, out_dims):
    return fused_sequential(x, ws_bf16, bias_pack, relu_flags, out_dims)


def _pack_biases(biases, out_dims):
    """Pack per-layer biases into one (n_blocks, max_w) f32 array."""
    max_w = max(out_dims)
    packed = jnp.zeros((len(biases), max_w), jnp.float32)
    for i, b in enumerate(biases):
        packed = packed.at[i, : b.shape[0]].set(b.astype(jnp.float32))
    return packed


class LinearBlock:
    """One Linear(+ReLU) block; params pre-converted once at construction."""

    def __init__(self, w, b, relu=True):
        self.w_bf16 = jnp.asarray(w, COMPUTE_DTYPE)      # stored bf16, no per-call cast
        self.b_f32 = jnp.asarray(b, jnp.float32)
        self.relu = relu
        self.out_dim = self.w_bf16.shape[1]

    def __call__(self, x, *args, **kwargs):
        bias_pack = self.b_f32.reshape(1, -1)
        return _jit_fused_forward(x, (self.w_bf16,), bias_pack,
                                  (self.relu,), (self.out_dim,))


class PallasSequential:
    """Mirror of the PyTorch `Sequential` container.

    Semantics are identical to `for block in blocks: x = block(x)`.  When every
    block is a LinearBlock, the entire chain is lowered to a single fused
    pallas_call (one launch, VMEM-resident weights + intermediates); fused
    params are prepared once at construction time.
    """

    def __init__(self, blocks):
        self.blocks = list(blocks)
        self._fused = bool(self.blocks) and all(
            isinstance(b, LinearBlock) for b in self.blocks)
        if self._fused:
            self._ws = tuple(b.w_bf16 for b in self.blocks)
            self._relu_flags = tuple(b.relu for b in self.blocks)
            self._out_dims = tuple(b.out_dim for b in self.blocks)
            self._bias_pack = _pack_biases([b.b_f32 for b in self.blocks],
                                           self._out_dims)

    def __call__(self, x, *args, **kwargs):
        if self._fused:
            return _jit_fused_forward(x, self._ws, self._bias_pack,
                                      self._relu_flags, self._out_dims)
        # Generic fallback: plain sequential chaining (exact torch semantics).
        for block in self.blocks:
            x = block(x, *args, **kwargs)
        return x


def make_linear_params(key, in_f, out_f):
    """Deterministic nn.Linear-style init (uniform bound = 1/sqrt(in))."""
    kw, kb = jax.random.split(key)
    bound = 1.0 / (in_f ** 0.5)
    w = jax.random.uniform(kw, (in_f, out_f), jnp.float32, -bound, bound)
    b = jax.random.uniform(kb, (out_f,), jnp.float32, -bound, bound)
    return w, b


def reference_forward(x, params, relu_flags):
    """Pure-JAX reference using the same bf16-input / f32-accumulate recipe."""
    n = len(relu_flags)
    y = x.astype(COMPUTE_DTYPE)
    for i, ((w, b), relu) in enumerate(zip(params, relu_flags)):
        acc = jnp.dot(y, w.astype(COMPUTE_DTYPE),
                      preferred_element_type=jnp.float32)
        acc = acc + b.astype(jnp.float32)
        if relu:
            acc = jnp.maximum(acc, 0.0)
        y = acc.astype(x.dtype) if i == n - 1 else acc.astype(COMPUTE_DTYPE)
    return y


if __name__ == "__main__":
    key = jax.random.PRNGKey(0)
    k_in, k0, k1, k2 = jax.random.split(key, 4)

    # Lane-dense demo shapes: batch is a multiple of the 16-row bf16 tile
    # (grid of 2 steps -> pipelined activation DMAs, parallel over cores),
    # feature dims are 128/256 multiples so stores are unmasked full-vreg
    # writes and the MXU sees lane-dense operands.
    batch, d_in, d_hidden, d_out = 32, 128, 256, 128
    x = jax.random.normal(k_in, (batch, d_in), jnp.float32)

    w0, b0 = make_linear_params(k0, d_in, d_hidden)
    w1, b1 = make_linear_params(k1, d_hidden, d_hidden)
    w2, b2 = make_linear_params(k2, d_hidden, d_out)

    model = PallasSequential([
        LinearBlock(w0, b0, relu=True),
        LinearBlock(w1, b1, relu=True),
        LinearBlock(w2, b2, relu=False),
    ])

    out = model(x)
    jax.block_until_ready(out)

    params = ((w0, b0), (w1, b1), (w2, b2))
    relu_flags = (True, True, False)
    ref = reference_forward(x, params, relu_flags)

    assert out.shape == (batch, d_out), out.shape
    assert out.dtype == x.dtype, out.dtype
    # bf16 MXU inputs => loosened tolerance vs the identically-quantized
    # pure-JAX reference.
    assert jnp.allclose(out, ref, atol=2e-2, rtol=2e-2), "mismatch vs reference"

    print("KERNEL_OK")
</pallas_src>

<mosaic_0001>
module attributes {stable_mosaic.version = 11 : i64} {
  func.func @_fused_sequential_kernel(%arg0: i32, %arg1: memref<16x128xf32, #tpu.memory_space<vmem>>, %arg2: memref<128x256xbf16, #tpu.memory_space<vmem>>, %arg3: memref<256x256xbf16, #tpu.memory_space<vmem>>, %arg4: memref<256x128xbf16, #tpu.memory_space<vmem>>, %arg5: memref<3x256xf32, #tpu.memory_space<vmem>>, %arg6: memref<16x128xf32, #tpu.memory_space<vmem>>) attributes {dimension_semantics = [#tpu.dimension_semantics<parallel>], iteration_bounds = array<i64: 2>, scalar_prefetch = 0 : i64, scratch_operands = 0 : i64, tpu.core_type = #tpu.core_type<tc>, window_params = [{transform_indices = @transform_0, window_bounds = array<i64: 16, 128>}, {pipeline_mode = #tpu.pipeline_mode<synchronous>, transform_indices = @transform_1, window_bounds = array<i64: 128, 256>}, {pipeline_mode = #tpu.pipeline_mode<synchronous>, transform_indices = @transform_2, window_bounds = array<i64: 256, 256>}, {pipeline_mode = #tpu.pipeline_mode<synchronous>, transform_indices = @transform_3, window_bounds = array<i64: 256, 128>}, {pipeline_mode = #tpu.pipeline_mode<synchronous>, transform_indices = @transform_4, window_bounds = array<i64: 3, 256>}, {transform_indices = @transform_5, window_bounds = array<i64: 16, 128>}]} {
    %c0 = arith.constant 0 : index
    %c0_0 = arith.constant 0 : index
    %0 = vector.load %arg1[%c0, %c0_0] : memref<16x128xf32, #tpu.memory_space<vmem>>, vector<16x128xf32>
    %1 = arith.truncf %0 : vector<16x128xf32> to vector<16x128xbf16>
    %c0_1 = arith.constant 0 : index
    %c0_2 = arith.constant 0 : index
    %2 = vector.load %arg2[%c0_1, %c0_2] : memref<128x256xbf16, #tpu.memory_space<vmem>>, vector<128x256xbf16>
    %c0_3 = arith.constant 0 : index
    %c0_4 = arith.constant 0 : index
    %3 = vector.load %arg5[%c0_3, %c0_4] : memref<3x256xf32, #tpu.memory_space<vmem>>, vector<1x256xf32>
    %cst = arith.constant dense<0.000000e+00> : vector<16x256xf32>
    %4 = tpu.matmul %1, %2, %cst {dimension_numbers = #tpu.dot_dimension_numbers<[1], [0], [0], [1], [0, 0, 1, 1], [], []>} : vector<16x128xbf16>, vector<128x256xbf16>, vector<16x256xf32> -> vector<16x256xf32>
    %5 = vector.broadcast %3 : vector<1x256xf32> to vector<16x256xf32>
    %6 = arith.addf %4, %5 : vector<16x256xf32>
    %cst_5 = arith.constant 0.000000e+00 : f32
    %7 = vector.broadcast %cst_5 : f32 to vector<16x256xf32>
    %8 = arith.maximumf %6, %7 : vector<16x256xf32>
    %9 = arith.truncf %8 : vector<16x256xf32> to vector<16x256xbf16>
    %c0_6 = arith.constant 0 : index
    %c0_7 = arith.constant 0 : index
    %10 = vector.load %arg3[%c0_6, %c0_7] : memref<256x256xbf16, #tpu.memory_space<vmem>>, vector<256x256xbf16>
    %c1 = arith.constant 1 : index
    %c0_8 = arith.constant 0 : index
    %11 = vector.load %arg5[%c1, %c0_8] : memref<3x256xf32, #tpu.memory_space<vmem>>, vector<1x256xf32>
    %cst_9 = arith.constant dense<0.000000e+00> : vector<16x256xf32>
    %12 = tpu.matmul %9, %10, %cst_9 {dimension_numbers = #tpu.dot_dimension_numbers<[1], [0], [0], [1], [0, 0, 1, 1], [], []>} : vector<16x256xbf16>, vector<256x256xbf16>, vector<16x256xf32> -> vector<16x256xf32>
    %13 = vector.broadcast %11 : vector<1x256xf32> to vector<16x256xf32>
    %14 = arith.addf %12, %13 : vector<16x256xf32>
    %cst_10 = arith.constant 0.000000e+00 : f32
    %15 = vector.broadcast %cst_10 : f32 to vector<16x256xf32>
    %16 = arith.maximumf %14, %15 : vector<16x256xf32>
    %17 = arith.truncf %16 : vector<16x256xf32> to vector<16x256xbf16>
    %c0_11 = arith.constant 0 : index
    %c0_12 = arith.constant 0 : index
    %18 = vector.load %arg4[%c0_11, %c0_12] : memref<256x128xbf16, #tpu.memory_space<vmem>>, vector<256x128xbf16>
    %c2 = arith.constant 2 : index
    %c0_13 = arith.constant 0 : index
    %19 = vector.load %arg5[%c2, %c0_13] : memref<3x256xf32, #tpu.memory_space<vmem>>, vector<1x128xf32>
    %cst_14 = arith.constant dense<0.000000e+00> : vector<16x128xf32>
    %20 = tpu.matmul %17, %18, %cst_14 {dimension_numbers = #tpu.dot_dimension_numbers<[1], [0], [0], [1], [0, 0, 1, 1], [], []>} : vector<16x256xbf16>, vector<256x128xbf16>, vector<16x128xf32> -> vector<16x128xf32>
    %21 = vector.broadcast %19 : vector<1x128xf32> to vector<16x128xf32>
    %22 = arith.addf %20, %21 : vector<16x128xf32>
    %c0_15 = arith.constant 0 : index
    %c0_16 = arith.constant 0 : index
    %23 = vector.load %arg6[%c0_15, %c0_16] : memref<16x128xf32, #tpu.memory_space<vmem>>, vector<16x128xf32>
    tpu.vector_store %arg6[%c0_15, %c0_16], %22 {strides = array<i32>} : memref<16x128xf32, #tpu.memory_space<vmem>>, vector<16x128xf32>,
    return
  }
  func.func @transform_0(%arg0: i32) -> (i32, i32) {
    %c0_i32 = arith.constant 0 : i32
    %c0_i32_0 = arith.constant 0 : i32
    return %arg0, %c0_i32 : i32, i32
  }
  func.func @transform_1(%arg0: i32) -> (i32, i32) {
    %c0_i32 = arith.constant 0 : i32
    %c0_i32_0 = arith.constant 0 : i32
    %c0_i32_1 = arith.constant 0 : i32
    return %c0_i32, %c0_i32_0 : i32, i32
  }
  func.func @transform_2(%arg0: i32) -> (i32, i32) {
    %c0_i32 = arith.constant 0 : i32
    %c0_i32_0 = arith.constant 0 : i32
    %c0_i32_1 = arith.constant 0 : i32
    return %c0_i32, %c0_i32_0 : i32, i32
  }
  func.func @transform_3(%arg0: i32) -> (i32, i32) {
    %c0_i32 = arith.constant 0 : i32
    %c0_i32_0 = arith.constant 0 : i32
    %c0_i32_1 = arith.constant 0 : i32
    return %c0_i32, %c0_i32_0 : i32, i32
  }
  func.func @transform_4(%arg0: i32) -> (i32, i32) {
    %c0_i32 = arith.constant 0 : i32
    %c0_i32_0 = arith.constant 0 : i32
    %c0_i32_1 = arith.constant 0 : i32
    return %c0_i32, %c0_i32_0 : i32, i32
  }
  func.func @transform_5(%arg0: i32) -> (i32, i32) {
    %c0_i32 = arith.constant 0 : i32
    %c0_i32_0 = arith.constant 0 : i32
    return %arg0, %c0_i32 : i32, i32
  }
}

</mosaic_0001>

<llo_original>
// kernel: _jit_fused_forward.1
$region0: #{_jit_fused_forward.1}
  #allocation0 [shape = 'u32[]', space=smem, size = 0x4, offset = 0x4, fixed_abs, tag = 'smem constant byte address 0x4 - core index']
  #allocation1 [shape = 'u32[144,128]{1,0:T(1,128)}', space=vmem, size = 0x12000, scoped, tag = 'internal scratch']
  %s0 = inlined_call_operand.hbm [shape: f32[32,128], index: 0, kind: input, shape index: {}]
  %s1 = inlined_call_operand.hbm [shape: bf16[128,256], index: 1, kind: input, shape index: {}]
  %s2 = inlined_call_operand.hbm [shape: bf16[256,256], index: 2, kind: input, shape index: {}]
  %s3 = inlined_call_operand.hbm [shape: bf16[256,128], index: 3, kind: input, shape index: {}]
  %s4 = inlined_call_operand.vmem [shape: f32[3,256], index: 4, kind: input, shape index: {}]
  %s5 = inlined_call_operand.hbm [shape: f32[32,128], index: 5, kind: output, shape index: {}]
  %s6 = sld [smem:[#allocation0]]
  $region69: #{_jit_fused_forward.1} parent=0
    _
  %s8 = ssub.s32 1, %s6
  %s9 = scalar_select 0, %s8, %s6
  $region1: #{_jit_fused_forward.1} parent=0
    #allocation2 [shape = 'u8[16384]{0}', space=vmem, size = 0x4000, scoped, tag = 'input window, operand 0']
    #allocation3 [shape = 's32[2]{0}', space=sflag, size = 0x8, scoped, tag = 'scoped memory for _jit_fused_forward.1']
    #allocation4 [shape = 's32[2]{0}', space=sflag, size = 0x8, scoped, tag = 'scoped memory for _jit_fused_forward.1']
    #allocation5 [shape = 'u8[65536]{0}', space=vmem, size = 0x10000, scoped, tag = 'input window, operand 1, single buffered']
    #allocation6 [shape = 's32[1]{0}', space=sflag, size = 0x4, scoped, tag = 'scoped memory for _jit_fused_forward.1']
    #allocation7 [shape = 'u8[131072]{0}', space=vmem, size = 0x20000, scoped, tag = 'input window, operand 2, single buffered']
    #allocation8 [shape = 'u8[65536]{0}', space=vmem, size = 0x10000, scoped, tag = 'input window, operand 3, single buffered']
    #allocation9 [shape = 's32[1]{0}', space=sflag, size = 0x4, scoped, tag = 'scoped memory for _jit_fused_forward.1']
    #allocation10 [shape = 'u8[16384]{0}', space=vmem, size = 0x4000, scoped, tag = 'output window, operand 0']
    %10 = vsyncpa [#allocation3], 0
    %s11 = scalar_lea.sflag [#allocation3], 1
    %12 = vsyncpa %s11, 0
    %13 = vsyncpa [#allocation6], 0
    %14 = vsyncpa [#allocation9], 0
    %15 = vsyncpa [#allocation4], 0
    %s16 = scalar_lea.sflag [#allocation4], 1
    %17 = vsyncpa %s16, 0
    loop: start=0, step=1, limit=4
    $region2: #{_jit_fused_forward.1} parent=1 // loop_pre_header
      _
    $region3: #{_jit_fused_forward.1} parent=1 // loop_header
      %s19 = sphi 0, %s23
      %p20 = scmp.ge.s32.totalorder %s19, 4
      %s29 = sphi 0, %s31
      %s32 = sphi 0, %s29
      %s33 = sphi 0, %s32
      %s49 = sphi 0, %s33
      %s53 = sphi 0, %s53
      %s55 = sphi 0, %s53
      %s56 = sphi 0, %s55
      %s70 = sphi 0, %s56
      %s74 = sphi 0, %s74
      %s76 = sphi 0, %s74
      %s77 = sphi 0, %s76
      %s91 = sphi 0, %s77
      %s95 = sphi 0, %s95
      %s97 = sphi 0, %s95
      %s98 = sphi 0, %s97
      %s112 = sphi 0, %s98
      %s116 = sphi 0, %s116
      %s118 = sphi 0, %s116
      %s119 = sphi 0, %s118
      %s133 = sphi 0, %s119
      %s139 = sphi 0, %s141
      %s142 = sphi 0, %s139
      %s143 = sphi 0, %s142
      %s159 = sphi 0, %s143
    $region4: #{_jit_fused_forward.1} parent=1 // loop_header_branch
      %22 = sbr.rel (%p20) target = $region8
    $region5: #{_jit_fused_forward.1} parent=1 // loop_body
      %s24 = ssub.s32 %s19, 1
      %s25 = ssub.s32 %s19, 2
      %s26 = sadd.s32 %s19, 1
      %s27 = ssub.s32 %s19, %s26
      %p28 = scmp.eq.s32.totalorder %s27, 0
      %s30 = sadd.s32 %s29, 1
      %s31 = scalar_select %p28, %s29, %s30
      %p34 = pneg %p28
      %p35 = scmp.eq.s32.totalorder %s19, 1
      %p36 = por %p34, %p35
      %p37 = scmp.ne.s32.totalorder %s29, %s32
      %p38 = scmp.eq.s32.totalorder %s19, 0
      %p39 = por %p37, %p38
      %p40 = scmp.ne.s32.totalorder %s29, %s32
      %p41 = scmp.eq.s32.totalorder %s24, 1
      %p42 = por %p40, %p41
      %p43 = scmp.ne.s32.totalorder %s32, %s33
      %p44 = scmp.eq.s32.totalorder %s24, 0
      %p45 = por %p43, %p44
      %p46 = scmp.ne.s32.totalorder %s32, %s33
      %p47 = scmp.eq.s32.totalorder %s25, 1
      %p48 = por %p46, %p47
      %p50 = scmp.ne.s32.totalorder %s33, %s49
      %p51 = scmp.eq.s32.totalorder %s25, 0
      %p52 = por %p50, %p51
      %s54 = sadd.s32 %s53, 1
      %p57 = scmp.eq.s32.totalorder %s19, 1
      %p58 = scmp.ne.s32.totalorder %s53, %s55
      %p59 = scmp.eq.s32.totalorder %s19, 0
      %p60 = por %p58, %p59
      %p61 = scmp.ne.s32.totalorder %s53, %s55
      %p62 = scmp.eq.s32.totalorder %s24, 1
      %p63 = por %p61, %p62
      %p64 = scmp.ne.s32.totalorder %s55, %s56
      %p65 = scmp.eq.s32.totalorder %s24, 0
      %p66 = por %p64, %p65
      %p67 = scmp.ne.s32.totalorder %s55, %s56
      %p68 = scmp.eq.s32.totalorder %s25, 1
      %p69 = por %p67, %p68
      %p71 = scmp.ne.s32.totalorder %s56, %s70
      %p72 = scmp.eq.s32.totalorder %s25, 0
      %p73 = por %p71, %p72
      %s75 = sadd.s32 %s74, 1
      %p78 = scmp.eq.s32.totalorder %s19, 1
      %p79 = scmp.ne.s32.totalorder %s74, %s76
      %p80 = scmp.eq.s32.totalorder %s19, 0
      %p81 = por %p79, %p80
      %p82 = scmp.ne.s32.totalorder %s74, %s76
      %p83 = scmp.eq.s32.totalorder %s24, 1
      %p84 = por %p82, %p83
      %p85 = scmp.ne.s32.totalorder %s76, %s77
      %p86 = scmp.eq.s32.totalorder %s24, 0
      %p87 = por %p85, %p86
      %p88 = scmp.ne.s32.totalorder %s76, %s77
      %p89 = scmp.eq.s32.totalorder %s25, 1
      %p90 = por %p88, %p89
      %p92 = scmp.ne.s32.totalorder %s77, %s91
      %p93 = scmp.eq.s32.totalorder %s25, 0
      %p94 = por %p92, %p93
      %s96 = sadd.s32 %s95, 1
      %p99 = scmp.eq.s32.totalorder %s19, 1
      %p100 = scmp.ne.s32.totalorder %s95, %s97
      %p101 = scmp.eq.s32.totalorder %s19, 0
      %p102 = por %p100, %p101
      %p103 = scmp.ne.s32.totalorder %s95, %s97
      %p104 = scmp.eq.s32.totalorder %s24, 1
      %p105 = por %p103, %p104
      %p106 = scmp.ne.s32.totalorder %s97, %s98
      %p107 = scmp.eq.s32.totalorder %s24, 0
      %p108 = por %p106, %p107
      %p109 = scmp.ne.s32.totalorder %s97, %s98
      %p110 = scmp.eq.s32.totalorder %s25, 1
      %p111 = por %p109, %p110
      %p113 = scmp.ne.s32.totalorder %s98, %s112
      %p114 = scmp.eq.s32.totalorder %s25, 0
      %p115 = por %p113, %p114
      %s117 = sadd.s32 %s116, 1
      %p120 = scmp.eq.s32.totalorder %s19, 1
      %p121 = scmp.ne.s32.totalorder %s116, %s118
      %p122 = scmp.eq.s32.totalorder %s19, 0
      %p123 = por %p121, %p122
      %p124 = scmp.ne.s32.totalorder %s116, %s118
      %p125 = scmp.eq.s32.totalorder %s24, 1
      %p126 = por %p124, %p125
      %p127 = scmp.ne.s32.totalorder %s118, %s119
      %p128 = scmp.eq.s32.totalorder %s24, 0
      %p129 = por %p127, %p128
      %p130 = scmp.ne.s32.totalorder %s118, %s119
      %p131 = scmp.eq.s32.totalorder %s25, 1
      %p132 = por %p130, %p131
      %p134 = scmp.ne.s32.totalorder %s119, %s133
      %p135 = scmp.eq.s32.totalorder %s25, 0
      %p136 = por %p134, %p135
      %s137 = ssub.s32 %s19, %s26
      %p138 = scmp.eq.s32.totalorder %s137, 0
      %s140 = sadd.s32 %s139, 1
      %s141 = scalar_select %p138, %s139, %s140
      %p144 = pneg %p138
      %p145 = scmp.eq.s32.totalorder %s19, 1
      %p146 = por %p144, %p145
      %p147 = scmp.ne.s32.totalorder %s139, %s142
      %p148 = scmp.eq.s32.totalorder %s19, 0
      %p149 = por %p147, %p148
      %p150 = scmp.ne.s32.totalorder %s139, %s142
      %p151 = scmp.eq.s32.totalorder %s24, 1
      %p152 = por %p150, %p151
      %p153 = scmp.ne.s32.totalorder %s142, %s143
      %p154 = scmp.eq.s32.totalorder %s24, 0
      %p155 = por %p153, %p154
      %p156 = scmp.ne.s32.totalorder %s142, %s143
      %p157 = scmp.eq.s32.totalorder %s25, 1
      %p158 = por %p156, %p157
      %p160 = scmp.ne.s32.totalorder %s143, %s159
      %p161 = scmp.eq.s32.totalorder %s25, 0
      %p162 = por %p160, %p161
      %p163 = scmp.le.s32.totalorder 1, %s19
      %p164 = scmp.lt.s32.totalorder %s19, 3
      %p165 = pnand %p163, %p164
      %p166 = pneg %p165
      // Predicated region
      $region9: #{_jit_fused_forward.1} parent=5 // pred_check
        _
      $region10: #{_jit_fused_forward.1} parent=5 // pred_check_branch
        %168 = sbr.rel (%p165) target = $region12
      $region11: #{_jit_fused_forward.1} parent=5 // pred_region
        %s169 = ssub.s32 %s19, 1
        // Predicated region
        $region13: #{_jit_fused_forward.1} parent=11 // pred_check
          %p170 = pneg %p66
        $region14: #{_jit_fused_forward.1} parent=11 // pred_check_branch
          %172 = sbr.rel (%p170) target = $region16
        $region15: #{_jit_fused_forward.1} parent=11 // pred_region
          %s174 = ssub.s32 2048, 2048
          %175 = vsyncadd [#allocation6], %s174
          %s176 = sshll.u32 [#allocation5], 4
          %s177 = int_to_ptr.vmem [resolvable:$true] %s176
          %182 = dma.hbm_to_vmem [thread:$0]  %s1, 2048, %s177, [#allocation6], 128, 128, 8
        $region16: #{_jit_fused_forward.1} parent=11 // pred_fallthru
          _
        // Predicated region
        $region17: #{_jit_fused_forward.1} parent=11 // pred_check
          %p183 = pneg %p87
        $region18: #{_jit_fused_forward.1} parent=11 // pred_check_branch
          %185 = sbr.rel (%p183) target = $region20
        $region19: #{_jit_fused_forward.1} parent=11 // pred_region
          %s187 = ssub.s32 4096, 4096
          %188 = vsyncadd [#allocation6], %s187
          %s189 = sshll.u32 [#allocation7], 4
          %s190 = int_to_ptr.vmem [resolvable:$true] %s189
          %195 = dma.hbm_to_vmem [thread:$0]  %s2, 4096, %s190, [#allocation6], 128, 128, 8
        $region20: #{_jit_fused_forward.1} parent=11 // pred_fallthru
          _
        // Predicated region
        $region21: #{_jit_fused_forward.1} parent=11 // pred_check
          %p196 = pneg %p108
        $region22: #{_jit_fused_forward.1} parent=11 // pred_check_branch
          %198 = sbr.rel (%p196) target = $region24
        $region23: #{_jit_fused_forward.1} parent=11 // pred_region
          %s200 = ssub.s32 2048, 2048
          %201 = vsyncadd [#allocation9], %s200
          %s202 = sshll.u32 [#allocation8], 4
          %s203 = int_to_ptr.vmem [resolvable:$true] %s202
          %208 = dma.hbm_to_vmem [thread:$0]  %s3, 2048, %s203, [#allocation9], 64, 64, 4
        $region24: #{_jit_fused_forward.1} parent=11 // pred_fallthru
          _
        // Predicated region
        $region25: #{_jit_fused_forward.1} parent=11 // pred_check
          %p209 = pneg %p129
        $region26: #{_jit_fused_forward.1} parent=11 // pred_check_branch
          %211 = sbr.rel (%p209) target = $region28
        $region27: #{_jit_fused_forward.1} parent=11 // pred_region
          _
        $region28: #{_jit_fused_forward.1} parent=11 // pred_fallthru
          _
      $region12: #{_jit_fused_forward.1} parent=5 // pred_fallthru
        _
      %p212 = scmp.lt.s32.totalorder %s19, 2
      // Predicated region
      $region29: #{_jit_fused_forward.1} parent=5 // pred_check
        %p213 = pneg %p212
      $region30: #{_jit_fused_forward.1} parent=5 // pred_check_branch
        %215 = sbr.rel (%p213) target = $region32
      $region31: #{_jit_fused_forward.1} parent=5 // pred_region
        // Predicated region
        $region33: #{_jit_fused_forward.1} parent=31 // pred_check
          %p216 = pneg %p39
        $region34: #{_jit_fused_forward.1} parent=31 // pred_check_branch
          %218 = sbr.rel (%p216) target = $region36
        $region35: #{_jit_fused_forward.1} parent=31 // pred_region
          %s219 = sand.u32 %s29, 1
          %s220 = scalar_lea.sflag [#allocation3], %s219
          %s221 = sand.u32 %s29, 1
          %s222 = smul.addr %s221, 16
          %s223 = scalar_lea.vmem [#allocation2], %s222
          %s224 = smul.u32 2, %s19
          %s226 = ssub.s32 256, 256
          %227 = vsyncadd %s220, %s226
          %s228 = smul.addr %s224, 128
          %s229 = scalar_lea.hbm %s0, %s228
          %s230 = sshll.u32 %s223, 4
          %s231 = int_to_ptr.vmem [resolvable:$true] %s230
          %236 = dma.hbm_to_vmem [thread:$0]  %s229, 256, %s231, %s220, 128, 128, 8
        $region36: #{_jit_fused_forward.1} parent=31 // pred_fallthru
          _
      $region32: #{_jit_fused_forward.1} parent=5 // pred_fallthru
        _
      %p237 = scmp.le.s32.totalorder 1, %s19
      %p238 = scmp.lt.s32.totalorder %s19, 3
      %p239 = pnand %p237, %p238
      %p240 = pneg %p239
      // Predicated region
      $region37: #{_jit_fused_forward.1} parent=5 // pred_check
        _
      $region38: #{_jit_fused_forward.1} parent=5 // pred_check_branch
        %242 = sbr.rel (%p239) target = $region40
      $region39: #{_jit_fused_forward.1} parent=5 // pred_region
        %s243 = ssub.s32 %s19, 1
        %s244 = sand.u32 %s32, 1
        %s245 = scalar_lea.sflag [#allocation3], %s244
        %s246 = sand.u32 %s32, 1
        %s247 = smul.addr %s246, 16
        %s248 = scalar_lea.vmem [#allocation2], %s247
        // Predicated region
        $region41: #{_jit_fused_forward.1} parent=39 // pred_check
          %p249 = pneg %p45
        $region42: #{_jit_fused_forward.1} parent=39 // pred_check_branch
          %251 = sbr.rel (%p249) target = $region44
        $region43: #{_jit_fused_forward.1} parent=39 // pred_region
          %252 = dma.done %s245, 256
        $region44: #{_jit_fused_forward.1} parent=39 // pred_fallthru
          _
        // Predicated region
        $region45: #{_jit_fused_forward.1} parent=39 // pred_check
          %p253 = pneg %p66
        $region46: #{_jit_fused_forward.1} parent=39 // pred_check_branch
          %255 = sbr.rel (%p253) target = $region48
        $region47: #{_jit_fused_forward.1} parent=39 // pred_region
          %256 = dma.done [#allocation6], 2048
        $region48: #{_jit_fused_forward.1} parent=39 // pred_fallthru
          _
        // Predicated region
        $region49: #{_jit_fused_forward.1} parent=39 // pred_check
          %p257 = pneg %p87
        $region50: #{_jit_fused_forward.1} parent=39 // pred_check_branch
          %259 = sbr.rel (%p257) target = $region52
        $region51: #{_jit_fused_forward.1} parent=39 // pred_region
          %260 = dma.done [#allocation6], 4096
        $region52: #{_jit_fused_forward.1} parent=39 // pred_fallthru
          _
        // Predicated region
        $region53: #{_jit_fused_forward.1} parent=39 // pred_check
          %p261 = pneg %p108
        $region54: #{_jit_fused_forward.1} parent=39 // pred_check_branch
          %263 = sbr.rel (%p261) target = $region56
        $region55: #{_jit_fused_forward.1} parent=39 // pred_region
          %264 = dma.done [#allocation9], 2048
        $region56: #{_jit_fused_forward.1} parent=39 // pred_fallthru
          _
        %s265 = sand.u32 %s32, 1
        %s266 = scalar_lea.sflag [#allocation3], %s265
        %s267 = sand.u32 %s32, 1
        %s268 = smul.addr %s267, 16
        %s269 = scalar_lea.vmem [#allocation2], %s268
        %p270 = pneg %p45
        %p271 = pneg %p42
        %p272 = pneg %p66
        %p273 = pneg %p63
        %p274 = pneg %p87
        %p275 = pneg %p84
        %p276 = pneg %p108
        %p277 = pneg %p105
        %p278 = pneg %p129
        %p279 = pneg %p126
        %p280 = pneg %p155
        %p281 = pneg %p152
        %s282 = sand.u32 %s142, 1
        %s283 = scalar_lea.sflag [#allocation4], %s282
        %s284 = sand.u32 %s142, 1
        %s285 = smul.addr %s284, 16
        %s286 = scalar_lea.vmem [#allocation10], %s285
        %s287 = smul.u32 2, %s24
        %s288 = smul.u32 2, %s24
        %v290 = vld [vmem:[%s248] sm:$0xff]
        %v291 = vld [vmem:[%s248 + $0x8] sm:$0xff]
        %v292 = vpack.c.bf16 %v291, %v290
        %v293 = vld [vmem:[#allocation5] sm:$0xff]
        %v294 = vld [vmem:[#allocation5 + $0x8] sm:$0xff]
        %v295 = vld [vmem:[#allocation5 + $0x10] sm:$0xff]
        %v296 = vld [vmem:[#allocation5 + $0x18] sm:$0xff]
        %v297 = vld [vmem:[#allocation5 + $0x20] sm:$0xff]
        %v298 = vld [vmem:[#allocation5 + $0x28] sm:$0xff]
        %v299 = vld [vmem:[#allocation5 + $0x30] sm:$0xff]
        %v300 = vld [vmem:[#allocation5 + $0x38] sm:$0xff]
        %v301 = vld [vmem:[#allocation5 + $0x40] sm:$0xff]
        %v302 = vld [vmem:[#allocation5 + $0x48] sm:$0xff]
        %v303 = vld [vmem:[#allocation5 + $0x50] sm:$0xff]
        %v304 = vld [vmem:[#allocation5 + $0x58] sm:$0xff]
        %v305 = vld [vmem:[#allocation5 + $0x60] sm:$0xff]
        %v306 = vld [vmem:[#allocation5 + $0x68] sm:$0xff]
        %v307 = vld [vmem:[#allocation5 + $0x70] sm:$0xff]
        %v308 = vld [vmem:[#allocation5 + $0x78] sm:$0xff]
        %v309 = vld [vmem:[%s4] ss:$4 sm:$0x3]
        %v311 = vlaneseq
        %v312 = vshrl.u32 %v311, 7
        %v313 = vsub.s32 0, %v312
        %v314 = vrot.slane %v309, %v313
        %v315 = vlaneseq
        %v316 = vshrl.u32 %v315, 7
        %v317 = vsub.s32 1, %v316
        %v318 = vrot.slane %v309, %v317
        %v337 = vunpack.c.l.b16 %v293
        %v338 = vunpack.c.h.b16 %v293
        %v339 = vunpack.c.l.b16 %v294
        %v340 = vunpack.c.h.b16 %v294
        %v341 = vunpack.c.l.b16 %v295
        %v342 = vunpack.c.h.b16 %v295
        %v343 = vunpack.c.l.b16 %v296
        %v344 = vunpack.c.h.b16 %v296
        %v345 = vunpack.c.l.b16 %v297
        %v346 = vunpack.c.h.b16 %v297
        %v347 = vunpack.c.l.b16 %v298
        %v348 = vunpack.c.h.b16 %v298
        %v349 = vunpack.c.l.b16 %v299
        %v350 = vunpack.c.h.b16 %v299
        %v351 = vunpack.c.l.b16 %v300
        %v352 = vunpack.c.h.b16 %v300
        %v353 = vunpack.c.l.b16 %v301
        %v354 = vunpack.c.h.b16 %v301
        %v355 = vunpack.c.l.b16 %v302
        %v356 = vunpack.c.h.b16 %v302
        %v357 = vunpack.c.l.b16 %v303
        %v358 = vunpack.c.h.b16 %v303
        %v359 = vunpack.c.l.b16 %v304
        %v360 = vunpack.c.h.b16 %v304
        %v361 = vunpack.c.l.b16 %v305
        %v362 = vunpack.c.h.b16 %v305
        %v363 = vunpack.c.l.b16 %v306
        %v364 = vunpack.c.h.b16 %v306
        %v365 = vunpack.c.l.b16 %v307
        %v366 = vunpack.c.h.b16 %v307
        %v367 = vunpack.c.l.b16 %v308
        %v368 = vunpack.c.h.b16 %v308
        %v369 = vpack.c.b16 %v339, %v337
        %v370 = vpack.c.b16 %v340, %v338
        %v371 = vpack.c.b16 %v343, %v341
        %v372 = vpack.c.b16 %v344, %v342
        %v373 = vpack.c.b16 %v347, %v345
        %v374 = vpack.c.b16 %v348, %v346
        %v375 = vpack.c.b16 %v351, %v349
        %v376 = vpack.c.b16 %v352, %v350
        %v377 = vpack.c.b16 %v355, %v353
        %v378 = vpack.c.b16 %v356, %v354
        %v379 = vpack.c.b16 %v359, %v357
        %v380 = vpack.c.b16 %v360, %v358
        %v381 = vpack.c.b16 %v363, %v361
        %v382 = vpack.c.b16 %v364, %v362
        %v383 = vpack.c.b16 %v367, %v365
        %v384 = vpack.c.b16 %v368, %v366
        %401 = vmatprep.subr.bf16.mxu0 %v370
        %402 = vmatpush1.bf16.msra.mxu0 %v369
        %403 = vmatprep.subr.bf16.mxu0 %v372
        %404 = vmatpush1.bf16.msra.mxu0 %v371
        %405 = vmatprep.subr.bf16.mxu0 %v374
        %406 = vmatpush1.bf16.msra.mxu0 %v373
        %407 = vmatprep.subr.bf16.mxu0 %v376
        %408 = vmatpush1.bf16.msra.mxu0 %v375
        %409 = vmatprep.subr.bf16.mxu0 %v378
        %410 = vmatpush1.bf16.msra.mxu0 %v377
        %411 = vmatprep.subr.bf16.mxu0 %v380
        %412 = vmatpush1.bf16.msra.mxu0 %v379
        %413 = vmatprep.subr.bf16.mxu0 %v382
        %414 = vmatpush1.bf16.msra.mxu0 %v381
        %415 = vmatprep.subr.bf16.mxu0 %v384
        %416 = vmatpush1.bf16.msra.mxu0 %v383
        %417 = vmatprep.subr.bf16.mxu0 0
        %418 = vmatpush1.bf16.msra.mxu0 0
        %419 = vmatprep.subr.bf16.mxu0 0
        %420 = vmatpush1.bf16.msra.mxu0 0
        %421 = vmatprep.subr.bf16.mxu0 0
        %422 = vmatpush1.bf16.msra.mxu0 0
        %423 = vmatprep.subr.bf16.mxu0 0
        %424 = vmatpush1.bf16.msra.mxu0 0
        %425 = vmatprep.subr.bf16.mxu0 0
        %426 = vmatpush1.bf16.msra.mxu0 0
        %427 = vmatprep.subr.bf16.mxu0 0
        %428 = vmatpush1.bf16.msra.mxu0 0
        %429 = vmatprep.subr.bf16.mxu0 0
        %430 = vmatpush1.bf16.msra.mxu0 0
        %431 = vmatprep.subr.bf16.mxu0 0
        %432 = vmatpush1.bf16.msra.mxu0 0
        %433 = vmatprep.mubr.bf16.mxu0 0
        %434 = vmatmul.mubr.bf16.gmra.mrb[0].mxu0 %v292
        %v435 = vpop.f32.mrb[0].mxu0
        %v436 = vadd.f32 %v314, %v435
        %v437 = vpop.f32.mrb[0].mxu0
        %v438 = vadd.f32 %v318, %v437
        %v439 = vpop.f32.mrb[0].mxu0
        %v440 = vadd.f32 %v314, %v439
        %v441 = vpop.f32.mrb[0].mxu0
        %v442 = vadd.f32 %v318, %v441
        %443 = vdwg.mxu0
        %v444 = vmax.f32 %v436, 0.0
        %v445 = vmax.f32 %v438, 0.0
        %v446 = vmax.f32 %v440, 0.0
        %v447 = vmax.f32 %v442, 0.0
        %v448 = vpack.c.bf16 %v446, %v444
        %v449 = vpack.c.bf16 %v447, %v445
        %v450 = vld [vmem:[#allocation7] sm:$0xff]
        %v451 = vld [vmem:[#allocation7 + $0x8] sm:$0xff]
        %v452 = vld [vmem:[#allocation7 + $0x10] sm:$0xff]
        %v453 = vld [vmem:[#allocation7 + $0x18] sm:$0xff]
        %v454 = vld [vmem:[#allocation7 + $0x20] sm:$0xff]
        %v455 = vld [vmem:[#allocation7 + $0x28] sm:$0xff]
        %v456 = vld [vmem:[#allocation7 + $0x30] sm:$0xff]
        %v457 = vld [vmem:[#allocation7 + $0x38] sm:$0xff]
        %v458 = vld [vmem:[#allocation7 + $0x40] sm:$0xff]
        %v459 = vld [vmem:[#allocation7 + $0x48] sm:$0xff]
        %v460 = vld [vmem:[#allocation7 + $0x50] sm:$0xff]
        %v461 = vld [vmem:[#allocation7 + $0x58] sm:$0xff]
        %v462 = vld [vmem:[#allocation7 + $0x60] sm:$0xff]
        %v463 = vld [vmem:[#allocation7 + $0x68] sm:$0xff]
        %v464 = vld [vmem:[#allocation7 + $0x70] sm:$0xff]
        %v465 = vld [vmem:[#allocation7 + $0x78] sm:$0xff]
        %v466 = vld [vmem:[#allocation7 + $0x80] sm:$0xff]
        %v467 = vld [vmem:[#allocation7 + $0x88] sm:$0xff]
        %v468 = vld [vmem:[#allocation7 + $0x90] sm:$0xff]
        %v469 = vld [vmem:[#allocation7 + $0x98] sm:$0xff]
        %v470 = vld [vmem:[#allocation7 + $0xa0] sm:$0xff]
        %v471 = vld [vmem:[#allocation7 + $0xa8] sm:$0xff]
        %v472 = vld [vmem:[#allocation7 + $0xb0] sm:$0xff]
        %v473 = vld [vmem:[#allocation7 + $0xb8] sm:$0xff]
        %v474 = vld [vmem:[#allocation7 + $0xc0] sm:$0xff]
        %v475 = vld [vmem:[#allocation7 + $0xc8] sm:$0xff]
        %v476 = vld [vmem:[#allocation7 + $0xd0] sm:$0xff]
        %v477 = vld [vmem:[#allocation7 + $0xd8] sm:$0xff]
        %v478 = vld [vmem:[#allocation7 + $0xe0] sm:$0xff]
        %v479 = vld [vmem:[#allocation7 + $0xe8] sm:$0xff]
        %v480 = vld [vmem:[#allocation7 + $0xf0] sm:$0xff]
        %v481 = vld [vmem:[#allocation7 + $0xf8] sm:$0xff]
        %s482 = scalar_lea.vmem %s4, 1
        %v483 = vld [vmem:[%s482] ss:$4 sm:$0x3]
        %v485 = vlaneseq
        %v486 = vshrl.u32 %v485, 7
        %v487 = vsub.s32 0, %v486
        %v488 = vrot.slane %v483, %v487
        %v489 = vlaneseq
        %v490 = vshrl.u32 %v489, 7
        %v491 = vsub.s32 1, %v490
        %v492 = vrot.slane %v483, %v491
        %v527 = vunpack.c.l.b16 %v450
        %v528 = vunpack.c.h.b16 %v450
        %v529 = vunpack.c.l.b16 %v451
        %v530 = vunpack.c.h.b16 %v451
        %v531 = vunpack.c.l.b16 %v452
        %v532 = vunpack.c.h.b16 %v452
        %v533 = vunpack.c.l.b16 %v453
        %v534 = vunpack.c.h.b16 %v453
        %v535 = vunpack.c.l.b16 %v454
        %v536 = vunpack.c.h.b16 %v454
        %v537 = vunpack.c.l.b16 %v455
        %v538 = vunpack.c.h.b16 %v455
        %v539 = vunpack.c.l.b16 %v456
        %v540 = vunpack.c.h.b16 %v456
        %v541 = vunpack.c.l.b16 %v457
        %v542 = vunpack.c.h.b16 %v457
        %v543 = vunpack.c.l.b16 %v458
        %v544 = vunpack.c.h.b16 %v458
        %v545 = vunpack.c.l.b16 %v459
        %v546 = vunpack.c.h.b16 %v459
        %v547 = vunpack.c.l.b16 %v460
        %v548 = vunpack.c.h.b16 %v460
        %v549 = vunpack.c.l.b16 %v461
        %v550 = vunpack.c.h.b16 %v461
        %v551 = vunpack.c.l.b16 %v462
        %v552 = vunpack.c.h.b16 %v462
        %v553 = vunpack.c.l.b16 %v463
        %v554 = vunpack.c.h.b16 %v463
        %v555 = vunpack.c.l.b16 %v464
        %v556 = vunpack.c.h.b16 %v464
        %v557 = vunpack.c.l.b16 %v465
        %v558 = vunpack.c.h.b16 %v465
        %v559 = vunpack.c.l.b16 %v466
        %v560 = vunpack.c.h.b16 %v466
        %v561 = vunpack.c.l.b16 %v467
        %v562 = vunpack.c.h.b16 %v467
        %v563 = vunpack.c.l.b16 %v468
        %v564 = vunpack.c.h.b16 %v468
        %v565 = vunpack.c.l.b16 %v469
        %v566 = vunpack.c.h.b16 %v469
        %v567 = vunpack.c.l.b16 %v470
        %v568 = vunpack.c.h.b16 %v470
        %v569 = vunpack.c.l.b16 %v471
        %v570 = vunpack.c.h.b16 %v471
        %v571 = vunpack.c.l.b16 %v472
        %v572 = vunpack.c.h.b16 %v472
        %v573 = vunpack.c.l.b16 %v473
        %v574 = vunpack.c.h.b16 %v473
        %v575 = vunpack.c.l.b16 %v474
        %v576 = vunpack.c.h.b16 %v474
        %v577 = vunpack.c.l.b16 %v475
        %v578 = vunpack.c.h.b16 %v475
        %v579 = vunpack.c.l.b16 %v476
        %v580 = vunpack.c.h.b16 %v476
        %v581 = vunpack.c.l.b16 %v477
        %v582 = vunpack.c.h.b16 %v477
        %v583 = vunpack.c.l.b16 %v478
        %v584 = vunpack.c.h.b16 %v478
        %v585 = vunpack.c.l.b16 %v479
        %v586 = vunpack.c.h.b16 %v479
        %v587 = vunpack.c.l.b16 %v480
        %v588 = vunpack.c.h.b16 %v480
        %v589 = vunpack.c.l.b16 %v481
        %v590 = vunpack.c.h.b16 %v481
        %v591 = vpack.c.b16 %v529, %v527
        %v592 = vpack.c.b16 %v530, %v528
        %v593 = vpack.c.b16 %v533, %v531
        %v594 = vpack.c.b16 %v534, %v532
        %v595 = vpack.c.b16 %v537, %v535
        %v596 = vpack.c.b16 %v538, %v536
        %v597 = vpack.c.b16 %v541, %v539
        %v598 = vpack.c.b16 %v542, %v540
        %v599 = vpack.c.b16 %v545, %v543
        %v600 = vpack.c.b16 %v546, %v544
        %v601 = vpack.c.b16 %v549, %v547
        %v602 = vpack.c.b16 %v550, %v548
        %v603 = vpack.c.b16 %v553, %v551
        %v604 = vpack.c.b16 %v554, %v552
        %v605 = vpack.c.b16 %v557, %v555
        %v606 = vpack.c.b16 %v558, %v556
        %v607 = vpack.c.b16 %v561, %v559
        %v608 = vpack.c.b16 %v562, %v560
        %v609 = vpack.c.b16 %v565, %v563
        %v610 = vpack.c.b16 %v566, %v564
        %v611 = vpack.c.b16 %v569, %v567
        %v612 = vpack.c.b16 %v570, %v568
        %v613 = vpack.c.b16 %v573, %v571
        %v614 = vpack.c.b16 %v574, %v572
        %v615 = vpack.c.b16 %v577, %v575
        %v616 = vpack.c.b16 %v578, %v576
        %v617 = vpack.c.b16 %v581, %v579
        %v618 = vpack.c.b16 %v582, %v580
        %v619 = vpack.c.b16 %v585, %v583
        %v620 = vpack.c.b16 %v586, %v584
        %v621 = vpack.c.b16 %v589, %v587
        %v622 = vpack.c.b16 %v590, %v588
        %655 = vmatprep.subr.bf16.mxu0 %v592
        %656 = vmatpush1.bf16.msra.mxu0 %v591
        %657 = vmatprep.subr.bf16.mxu0 %v594
        %658 = vmatpush1.bf16.msra.mxu0 %v593
        %659 = vmatprep.subr.bf16.mxu0 %v596
        %660 = vmatpush1.bf16.msra.mxu0 %v595
        %661 = vmatprep.subr.bf16.mxu0 %v598
        %662 = vmatpush1.bf16.msra.mxu0 %v597
        %663 = vmatprep.subr.bf16.mxu0 %v600
        %664 = vmatpush1.bf16.msra.mxu0 %v599
        %665 = vmatprep.subr.bf16.mxu0 %v602
        %666 = vmatpush1.bf16.msra.mxu0 %v601
        %667 = vmatprep.subr.bf16.mxu0 %v604
        %668 = vmatpush1.bf16.msra.mxu0 %v603
        %669 = vmatprep.subr.bf16.mxu0 %v606
        %670 = vmatpush1.bf16.msra.mxu0 %v605
        %671 = vmatprep.subr.bf16.mxu0 %v608
        %672 = vmatpush1.bf16.msra.mxu0 %v607
        %673 = vmatprep.subr.bf16.mxu0 %v610
        %674 = vmatpush1.bf16.msra.mxu0 %v609
        %675 = vmatprep.subr.bf16.mxu0 %v612
        %676 = vmatpush1.bf16.msra.mxu0 %v611
        %677 = vmatprep.subr.bf16.mxu0 %v614
        %678 = vmatpush1.bf16.msra.mxu0 %v613
        %679 = vmatprep.subr.bf16.mxu0 %v616
        %680 = vmatpush1.bf16.msra.mxu0 %v615
        %681 = vmatprep.subr.bf16.mxu0 %v618
        %682 = vmatpush1.bf16.msra.mxu0 %v617
        %683 = vmatprep.subr.bf16.mxu0 %v620
        %684 = vmatpush1.bf16.msra.mxu0 %v619
        %685 = vmatprep.subr.bf16.mxu0 %v622
        %686 = vmatpush1.bf16.msra.mxu0 %v621
        %687 = vmatprep.mubr.bf16.mxu0 %v449
        %688 = vmatmul.mubr.bf16.gmra.mrb[0].mxu0 %v448
        %v689 = vpop.f32.mrb[0].mxu0
        %v690 = vadd.f32 %v488, %v689
        %v691 = vpop.f32.mrb[0].mxu0
        %v692 = vadd.f32 %v492, %v691
        %v693 = vpop.f32.mrb[0].mxu0
        %v694 = vadd.f32 %v488, %v693
        %v695 = vpop.f32.mrb[0].mxu0
        %v696 = vadd.f32 %v492, %v695
        %697 = vdwg.mxu0
        %v698 = vmax.f32 %v690, 0.0
        %v699 = vmax.f32 %v692, 0.0
        %v700 = vmax.f32 %v694, 0.0
        %v701 = vmax.f32 %v696, 0.0
        %v702 = vpack.c.bf16 %v700, %v698
        %v703 = vpack.c.bf16 %v701, %v699
        %v704 = vld [vmem:[#allocation8] sm:$0xf]
        %v705 = vld [vmem:[#allocation8 + $0x4] sm:$0xf]
        %v706 = vld [vmem:[#allocation8 + $0x8] sm:$0xf]
        %v707 = vld [vmem:[#allocation8 + $0xc] sm:$0xf]
        %v708 = vld [vmem:[#allocation8 + $0x10] sm:$0xf]
        %v709 = vld [vmem:[#allocation8 + $0x14] sm:$0xf]
        %v710 = vld [vmem:[#allocation8 + $0x18] sm:$0xf]
        %v711 = vld [vmem:[#allocation8 + $0x1c] sm:$0xf]
        %v712 = vld [vmem:[#allocation8 + $0x20] sm:$0xf]
        %v713 = vld [vmem:[#allocation8 + $0x24] sm:$0xf]
        %v714 = vld [vmem:[#allocation8 + $0x28] sm:$0xf]
        %v715 = vld [vmem:[#allocation8 + $0x2c] sm:$0xf]
        %v716 = vld [vmem:[#allocation8 + $0x30] sm:$0xf]
        %v717 = vld [vmem:[#allocation8 + $0x34] sm:$0xf]
        %v718 = vld [vmem:[#allocation8 + $0x38] sm:$0xf]
        %v719 = vld [vmem:[#allocation8 + $0x3c] sm:$0xf]
        %v720 = vld [vmem:[#allocation8 + $0x40] sm:$0xf]
        %v721 = vld [vmem:[#allocation8 + $0x44] sm:$0xf]
        %v722 = vld [vmem:[#allocation8 + $0x48] sm:$0xf]
        %v723 = vld [vmem:[#allocation8 + $0x4c] sm:$0xf]
        %v724 = vld [vmem:[#allocation8 + $0x50] sm:$0xf]
        %v725 = vld [vmem:[#allocation8 + $0x54] sm:$0xf]
        %v726 = vld [vmem:[#allocation8 + $0x58] sm:$0xf]
        %v727 = vld [vmem:[#allocation8 + $0x5c] sm:$0xf]
        %v728 = vld [vmem:[#allocation8 + $0x60] sm:$0xf]
        %v729 = vld [vmem:[#allocation8 + $0x64] sm:$0xf]
        %v730 = vld [vmem:[#allocation8 + $0x68] sm:$0xf]
        %v731 = vld [vmem:[#allocation8 + $0x6c] sm:$0xf]
        %v732 = vld [vmem:[#allocation8 + $0x70] sm:$0xf]
        %v733 = vld [vmem:[#allocation8 + $0x74] sm:$0xf]
        %v734 = vld [vmem:[#allocation8 + $0x78] sm:$0xf]
        %v735 = vld [vmem:[#allocation8 + $0x7c] sm:$0xf]
        %v736 = vld [vmem:[%s4 + $0x2] sm:$0x1]
        %v737 = vlaneseq
        %v738 = vshrl.u32 %v737, 7
        %v739 = vsub.s32 0, %v738
        %v740 = vrot.slane %v736, %v739
        %v773 = vunpack.c.l.b16 %v704
        %v774 = vunpack.c.l.b16 %v705
        %v775 = vunpack.c.l.b16 %v706
        %v776 = vunpack.c.l.b16 %v707
        %v777 = vunpack.c.l.b16 %v708
        %v778 = vunpack.c.l.b16 %v709
        %v779 = vunpack.c.l.b16 %v710
        %v780 = vunpack.c.l.b16 %v711
        %v781 = vunpack.c.l.b16 %v712
        %v782 = vunpack.c.l.b16 %v713
        %v783 = vunpack.c.l.b16 %v714
        %v784 = vunpack.c.l.b16 %v715
        %v785 = vunpack.c.l.b16 %v716
        %v786 = vunpack.c.l.b16 %v717
        %v787 = vunpack.c.l.b16 %v718
        %v788 = vunpack.c.l.b16 %v719
        %v789 = vunpack.c.l.b16 %v720
        %v790 = vunpack.c.l.b16 %v721
        %v791 = vunpack.c.l.b16 %v722
        %v792 = vunpack.c.l.b16 %v723
        %v793 = vunpack.c.l.b16 %v724
        %v794 = vunpack.c.l.b16 %v725
        %v795 = vunpack.c.l.b16 %v726
        %v796 = vunpack.c.l.b16 %v727
        %v797 = vunpack.c.l.b16 %v728
        %v798 = vunpack.c.l.b16 %v729
        %v799 = vunpack.c.l.b16 %v730
        %v800 = vunpack.c.l.b16 %v731
        %v801 = vunpack.c.l.b16 %v732
        %v802 = vunpack.c.l.b16 %v733
        %v803 = vunpack.c.l.b16 %v734
        %v804 = vunpack.c.l.b16 %v735
        %v805 = vpack.c.b16 %v774, %v773
        %v806 = vpack.c.b16 %v776, %v775
        %v807 = vpack.c.b16 %v778, %v777
        %v808 = vpack.c.b16 %v780, %v779
        %v809 = vpack.c.b16 %v782, %v781
        %v810 = vpack.c.b16 %v784, %v783
        %v811 = vpack.c.b16 %v786, %v785
        %v812 = vpack.c.b16 %v788, %v787
        %v813 = vpack.c.b16 %v790, %v789
        %v814 = vpack.c.b16 %v792, %v791
        %v815 = vpack.c.b16 %v794, %v793
        %v816 = vpack.c.b16 %v796, %v795
        %v817 = vpack.c.b16 %v798, %v797
        %v818 = vpack.c.b16 %v800, %v799
        %v819 = vpack.c.b16 %v802, %v801
        %v820 = vpack.c.b16 %v804, %v803
        %837 = vmatprep.subr.bf16.mxu0 0
        %838 = vmatpush1.bf16.msra.mxu0 %v805
        %839 = vmatprep.subr.bf16.mxu0 0
        %840 = vmatpush1.bf16.msra.mxu0 %v806
        %841 = vmatprep.subr.bf16.mxu0 0
        %842 = vmatpush1.bf16.msra.mxu0 %v807
        %843 = vmatprep.subr.bf16.mxu0 0
        %844 = vmatpush1.bf16.msra.mxu0 %v808
        %845 = vmatprep.subr.bf16.mxu0 0
        %846 = vmatpush1.bf16.msra.mxu0 %v809
        %847 = vmatprep.subr.bf16.mxu0 0
        %848 = vmatpush1.bf16.msra.mxu0 %v810
        %849 = vmatprep.subr.bf16.mxu0 0
        %850 = vmatpush1.bf16.msra.mxu0 %v811
        %851 = vmatprep.subr.bf16.mxu0 0
        %852 = vmatpush1.bf16.msra.mxu0 %v812
        %853 = vmatprep.subr.bf16.mxu0 0
        %854 = vmatpush1.bf16.msra.mxu0 %v813
        %855 = vmatprep.subr.bf16.mxu0 0
        %856 = vmatpush1.bf16.msra.mxu0 %v814
        %857 = vmatprep.subr.bf16.mxu0 0
        %858 = vmatpush1.bf16.msra.mxu0 %v815
        %859 = vmatprep.subr.bf16.mxu0 0
        %860 = vmatpush1.bf16.msra.mxu0 %v816
        %861 = vmatprep.subr.bf16.mxu0 0
        %862 = vmatpush1.bf16.msra.mxu0 %v817
        %863 = vmatprep.subr.bf16.mxu0 0
        %864 = vmatpush1.bf16.msra.mxu0 %v818
        %865 = vmatprep.subr.bf16.mxu0 0
        %866 = vmatpush1.bf16.msra.mxu0 %v819
        %867 = vmatprep.subr.bf16.mxu0 0
        %868 = vmatpush1.bf16.msra.mxu0 %v820
        %869 = vmatprep.mubr.bf16.mxu0 %v703
        %870 = vmatmul.mubr.bf16.gmra.mrb[0].mxu0 %v702
        %v871 = vpop.f32.mrb[0].mxu0
        %v872 = vadd.f32 %v740, %v871
        %v873 = vpop.f32.mrb[0].mxu0
        %v874 = vpop.f32.mrb[0].mxu0
        %v875 = vadd.f32 %v740, %v874
        %v876 = vpop.f32.mrb[0].mxu0
        %877 = vdwg.mxu0
        %878 = vst [vmem:[%s286] sm:$0xff] %v872
        %879 = vst [vmem:[%s286 + $0x8] sm:$0xff] %v875
        %s880 = sand.u32 %s142, 1
        %s881 = scalar_lea.sflag [#allocation4], %s880
        %s882 = sand.u32 %s142, 1
        %s883 = smul.addr %s882, 16
        %s884 = scalar_lea.vmem [#allocation10], %s883
        // Predicated region
        $region57: #{_jit_fused_forward.1} parent=39 // pred_check
          %p885 = pneg %p152
        $region58: #{_jit_fused_forward.1} parent=39 // pred_check_branch
          %887 = sbr.rel (%p885) target = $region60
        $region59: #{_jit_fused_forward.1} parent=39 // pred_region
          %s888 = smul.u32 2, %s24
          %s890 = ssub.s32 256, 256
          %891 = vsyncadd %s881, %s890
          %s892 = smul.addr %s888, 128
          %s893 = scalar_lea.hbm %s5, %s892
          %s894 = sshll.u32 %s884, 4
          %s895 = int_to_ptr.vmem [resolvable:$true] %s894
          %900 = dma.vmem_to_hbm [thread:$0]  %s895, 256, %s893, %s881, 128, 128, 8
        $region60: #{_jit_fused_forward.1} parent=39 // pred_fallthru
          _
      $region40: #{_jit_fused_forward.1} parent=5 // pred_fallthru
        _
      %p901 = scmp.le.s32.totalorder 2, %s19
      // Predicated region
      $region61: #{_jit_fused_forward.1} parent=5 // pred_check
        %p902 = pneg %p901
      $region62: #{_jit_fused_forward.1} parent=5 // pred_check_branch
        %904 = sbr.rel (%p902) target = $region64
      $region63: #{_jit_fused_forward.1} parent=5 // pred_region
        %s905 = ssub.s32 %s19, 2
        // Predicated region
        $region65: #{_jit_fused_forward.1} parent=63 // pred_check
          %p906 = pneg %p158
        $region66: #{_jit_fused_forward.1} parent=63 // pred_check_branch
          %908 = sbr.rel (%p906) target = $region68
        $region67: #{_jit_fused_forward.1} parent=63 // pred_region
          %s909 = sand.u32 %s143, 1
          %s910 = scalar_lea.sflag [#allocation4], %s909
          %s911 = sand.u32 %s143, 1
          %s912 = smul.addr %s911, 16
          %s913 = scalar_lea.vmem [#allocation10], %s912
          %914 = dma.done %s910, 256
        $region68: #{_jit_fused_forward.1} parent=63 // pred_fallthru
          _
      $region64: #{_jit_fused_forward.1} parent=5 // pred_fallthru
        _
    $region6: #{_jit_fused_forward.1} parent=1 // loop_footer
      %s23 = sadd.s32 1, %s19
    $region7: #{_jit_fused_forward.1} parent=1 // loop_footer_branch
      %18 = sbr.rel target = $region3
    $region8: #{_jit_fused_forward.1} parent=1 // loop_exit
      _
    %915 = vsyncpa [#allocation3], 1
    %s916 = scalar_lea.sflag [#allocation3], 1
    %917 = vsyncpa %s916, 1
    %918 = vsyncpa [#allocation6], 1
    %919 = vsyncpa [#allocation9], 1
    %920 = vsyncpa [#allocation4], 1
    %s921 = scalar_lea.sflag [#allocation4], 1
    %922 = vsyncpa %s921, 1

</llo_original>
